<compile_context>
chip_gen: v5e
topology: v5e:2x2
jax: 0.10.0
libtpu: 0.0.40
codegen_flags: <defaults>
</compile_context>

<pallas_src>
import functools
import math

import jax
import jax.numpy as jnp
from jax.experimental import pallas as pl
from jax.experimental.pallas import tpu as pltpu

EMB = 32          # embedding_size
HID = 16          # hidden_size
DROPOUT = 0.2     # dropout_percent


# --------------------------------------------------------------------------
# Kernel A: fused bidirectional recurrence.  Produces the (S*Bp, 2H) history
# with hLR[i] in lanes [0:H) and hRL[i+1] in lanes [H:2H) for row block i.
# --------------------------------------------------------------------------
def recurrence_kernel(emb_ref, wih_ref, b_ref, wrec_ref, h0_ref, m_ref,
                      hist_ref, *, seq_len, bp):
    S, Bp = seq_len, bp
    H2 = 2 * HID

    # One batched MXU matmul for ALL input-side projections (both directions,
    # all timesteps): (S*Bp, 2*EMB) bf16 @ (2*EMB, 2H) bf16 -> f32.
    x = (jnp.dot(emb_ref[...], wih_ref[...],
                 preferred_element_type=jnp.float32) + b_ref[...])
    m = m_ref[...]                                   # (S*Bp, 2H), pre-scaled
    w_rec = wrec_ref[...]                            # (2H, 2H) block-diagonal

    h = jnp.broadcast_to(h0_ref[...], (Bp, H2)).astype(jnp.float32)

    # History kept purely in vregs (no scratch stores on the serial chain).
    hf = [None] * S                                  # hf[i]     = hLR[i]
    hb = [None] * S                                  # hb[i]     = hRL[i+1]
    for u in range(S):
        hf[u] = h[:, :HID]                           # hLR[u]
        hb[S - 1 - u] = h[:, HID:]                   # hRL[S-u] = hRL[(S-1-u)+1]
        if u < S - 1:                                # hLR[S], hRL[0] unused
            x_u = x[u * Bp:(u + 1) * Bp, :]          # sublane-aligned slice
            m_u = m[u * Bp:(u + 1) * Bp, :]
            h = jnp.tanh(x_u + jnp.dot(h, w_rec,
                                       preferred_element_type=jnp.float32))
            h = h * m_u

    hist = jnp.concatenate(
        [jnp.concatenate([hf[i], hb[i]], axis=1) for i in range(S)], axis=0)
    hist_ref[...] = hist.astype(hist_ref.dtype)      # bf16 for the projection


# --------------------------------------------------------------------------
# Kernel B: gridded output projection + exact log-softmax (flash style).
# grid = (row_tiles, 2 phases, vocab_tiles).
#   phase 0: accumulate running max / logsumexp per row tile (scratch).
#   phase 1: recompute the cheap K=2H matmul, subtract lse, lane-dense store.
# --------------------------------------------------------------------------
def projection_kernel(hist_ref, who_ref, bho_ref, out_ref, m_scr, l_scr):
    p = pl.program_id(1)
    j = pl.program_id(2)

    logits = (jnp.dot(hist_ref[...], who_ref[...],
                      preferred_element_type=jnp.float32) + bho_ref[...])

    @pl.when(jnp.logical_and(p == 0, j == 0))
    def _init():
        m_scr[...] = jnp.full_like(m_scr, -jnp.inf)
        l_scr[...] = jnp.zeros_like(l_scr)

    @pl.when(p == 0)
    def _accumulate():
        m_old = m_scr[...]
        m_new = jnp.maximum(m_old, jnp.max(logits, axis=-1, keepdims=True))
        l_scr[...] = (jnp.exp(m_old - m_new) * l_scr[...]
                      + jnp.sum(jnp.exp(logits - m_new), axis=-1,
                                keepdims=True))
        m_scr[...] = m_new

    @pl.when(p == 1)
    def _write():
        lse = m_scr[...] + jnp.log(l_scr[...])
        out_ref[...] = logits - lse


def _pick_row_tile(rows):
    for cand in range(min(256, rows), 0, -1):
        if cand % 16 == 0 and rows % cand == 0:
            return cand
    return rows


def birnn_forward(input_batch, params, mask_lr, mask_rl):
    """Bidirectional RNN LM forward pass via two Pallas kernels."""
    S, B = input_batch.shape
    V = params["W_ho"].shape[1]
    scale = 1.0 / (1.0 - DROPOUT)

    Bp = ((B + 7) // 8) * 8                          # sublane-aligned batch
    rows = S * Bp

    Vp0 = ((V + 127) // 128) * 128
    V_T = min(2048, Vp0)                             # vocab tile (v7x-safe)
    Vp = ((Vp0 + V_T - 1) // V_T) * V_T
    ROWS_T = _pick_row_tile(rows)

    # ---- wrapper-side glue (gather, padding, fused-weight assembly) --------
    emb_f = params["embedding"][input_batch]                     # (S, B, EMB)
    emb_f = jnp.pad(emb_f, ((0, 0), (0, Bp - B), (0, 0)))
    emb_b = emb_f[::-1]                                          # time-reversed
    emb_comb = jnp.concatenate([emb_f, emb_b], axis=-1) \
                  .reshape(rows, 2 * EMB).astype(jnp.bfloat16)

    mlr = jnp.pad(mask_lr.astype(jnp.float32) * scale,
                  ((0, 0), (0, Bp - B), (0, 0)))
    mrl = jnp.pad(mask_rl.astype(jnp.float32) * scale,
                  ((0, 0), (0, Bp - B), (0, 0)))
    m_comb = jnp.concatenate([mlr, mrl[::-1]], axis=-1).reshape(rows, 2 * HID)

    zE = jnp.zeros((EMB, HID), jnp.float32)
    zH = jnp.zeros((HID, HID), jnp.float32)
    W_ih_comb = jnp.concatenate(
        [jnp.concatenate([params["W_ih_lr"][:EMB], zE], axis=1),
         jnp.concatenate([zE, params["W_ih_rl"][:EMB]], axis=1)],
        axis=0).astype(jnp.bfloat16)                             # (2E, 2H)
    W_rec = jnp.concatenate(
        [jnp.concatenate([params["W_ih_lr"][EMB:], zH], axis=1),
         jnp.concatenate([zH, params["W_ih_rl"][EMB:]], axis=1)],
        axis=0)                                                  # (2H, 2H) f32
    b_comb = jnp.concatenate([params["b_ih_lr"], params["b_ih_rl"]], axis=1)
    h0_comb = jnp.concatenate([params["initial_hidden"],
                               params["initial_hidden"]], axis=1)

    W_ho_p = (jnp.zeros((2 * HID, Vp), jnp.float32)
              .at[:, :V].set(params["W_ho"]).astype(jnp.bfloat16))
    b_ho_p = jnp.full((1, Vp), -1e30, jnp.float32).at[:, :V].set(params["b_ho"])

    # ---- kernel A: recurrence (single program, everything VMEM-resident) ---
    vmem = pl.BlockSpec(memory_space=pltpu.MemorySpace.VMEM)
    hist = pl.pallas_call(
        functools.partial(recurrence_kernel, seq_len=S, bp=Bp),
        out_shape=jax.ShapeDtypeStruct((rows, 2 * HID), jnp.bfloat16),
        in_specs=[vmem] * 6,
        out_specs=vmem,
    )(emb_comb, W_ih_comb, b_comb, W_rec, h0_comb, m_comb)

    # ---- kernel B: gridded projection + log-softmax ------------------------
    n_r = rows // ROWS_T
    n_v = Vp // V_T
    grid_spec = pltpu.PrefetchScalarGridSpec(
        num_scalar_prefetch=0,
        grid=(n_r, 2, n_v),
        in_specs=[
            pl.BlockSpec((ROWS_T, 2 * HID), lambda i, p, j: (i, 0)),
            pl.BlockSpec((2 * HID, V_T), lambda i, p, j: (0, j)),
            pl.BlockSpec((1, V_T), lambda i, p, j: (0, j)),
        ],
        # phase 0 parks on block (i, 0) without writing; phase 1 writes all.
        out_specs=pl.BlockSpec((ROWS_T, V_T), lambda i, p, j: (i, j * p)),
        scratch_shapes=[pltpu.VMEM((ROWS_T, 1), jnp.float32),   # running max
                        pltpu.VMEM((ROWS_T, 1), jnp.float32)],  # running sum
    )
    out = pl.pallas_call(
        projection_kernel,
        out_shape=jax.ShapeDtypeStruct((rows, Vp), jnp.float32),
        grid_spec=grid_spec,
        compiler_params=pltpu.CompilerParams(
            dimension_semantics=("parallel", "arbitrary", "arbitrary"),
            vmem_limit_bytes=32 * 1024 * 1024),
    )(hist, W_ho_p, b_ho_p)

    return out.reshape(S, Bp, Vp)[:, :B, :V]


def init_params(key, vocab_size):
    """Matches BiRNNLMwithDropout.init_params: uniform(-1/sqrt(H), 1/sqrt(H))."""
    stdv = 1.0 / math.sqrt(HID)
    ks = jax.random.split(key, 8)
    u = lambda k, shape: jax.random.uniform(k, shape, jnp.float32, -stdv, stdv)
    return {
        "W_ih_lr": u(ks[0], (EMB + HID, HID)),
        "b_ih_lr": u(ks[1], (1, HID)),
        "W_ih_rl": u(ks[2], (EMB + HID, HID)),
        "b_ih_rl": u(ks[3], (1, HID)),
        "embedding": u(ks[4], (vocab_size, EMB)),
        "W_ho": u(ks[5], (2 * HID, vocab_size)),
        "b_ho": u(ks[6], (1, vocab_size)),
        "initial_hidden": u(ks[7], (1, HID)),
    }


def reference_forward(input_batch, params, mask_lr, mask_rl):
    """Pure-JAX f32 reference mirroring the PyTorch forward exactly."""
    S, B = input_batch.shape
    scale = 1.0 / (1.0 - DROPOUT)
    emb = params["embedding"][input_batch]
    h0 = jnp.broadcast_to(params["initial_hidden"], (B, HID))

    hLR = [h0]
    h = h0
    for t in range(S):
        combined = jnp.concatenate([emb[t], h], axis=1)
        h = jnp.tanh(combined @ params["W_ih_lr"] + params["b_ih_lr"])
        h = h * mask_lr[t] * scale
        hLR.append(h)

    hRL = [None] * (S + 1)
    hRL[S] = h0
    h = h0
    for t in range(S, 0, -1):
        combined = jnp.concatenate([emb[t - 1], h], axis=1)
        h = jnp.tanh(combined @ params["W_ih_rl"] + params["b_ih_rl"])
        h = h * mask_rl[t - 1] * scale
        hRL[t - 1] = h

    preds = []
    for i in range(S):
        concat = jnp.concatenate([hLR[i], hRL[i + 1]], axis=1)
        logits = concat @ params["W_ho"] + params["b_ho"]
        preds.append(jax.nn.log_softmax(logits, axis=-1))
    return jnp.stack(preds, axis=0)


if __name__ == "__main__":
    SEQ_LEN, BATCH, VOCAB = 8, 2, 50

    key = jax.random.PRNGKey(0)
    k_params, k_tokens, k_mlr, k_mrl = jax.random.split(key, 4)

    params = init_params(k_params, VOCAB)
    input_batch = jax.random.randint(k_tokens, (SEQ_LEN, BATCH), 0, VOCAB,
                                     dtype=jnp.int32)

    # Deterministic Bernoulli(keep=0.8) dropout masks (0/1 floats), one per
    # recurrence step/direction — same role as np.random.binomial in PyTorch.
    keep = 1.0 - DROPOUT
    mask_lr = jax.random.bernoulli(k_mlr, keep,
                                   (SEQ_LEN, BATCH, HID)).astype(jnp.float32)
    mask_rl = jax.random.bernoulli(k_mrl, keep,
                                   (SEQ_LEN, BATCH, HID)).astype(jnp.float32)

    preds = birnn_forward(input_batch, params, mask_lr, mask_rl)
    preds = jax.block_until_ready(preds)

    ref = reference_forward(input_batch, params, mask_lr, mask_rl)
    assert preds.shape == (SEQ_LEN, BATCH, VOCAB)
    # bf16 MXU operands (per perf review) vs. f32 reference -> loosened tol.
    assert jnp.allclose(preds, ref, atol=2e-2, rtol=2e-2), "mismatch vs reference"

    print("KERNEL_OK")
</pallas_src>

<mosaic_0001>
module attributes {stable_mosaic.version = 11 : i64} {
  func.func @recurrence_kernel(%arg0: memref<64x64xbf16, #tpu.memory_space<vmem>>, %arg1: memref<64x32xbf16, #tpu.memory_space<vmem>>, %arg2: memref<1x32xf32, #tpu.memory_space<vmem>>, %arg3: memref<32x32xf32, #tpu.memory_space<vmem>>, %arg4: memref<1x32xf32, #tpu.memory_space<vmem>>, %arg5: memref<64x32xf32, #tpu.memory_space<vmem>>, %arg6: memref<64x32xbf16, #tpu.memory_space<vmem>>) attributes {dimension_semantics = [], scalar_prefetch = 0 : i64, scratch_operands = 0 : i64, tpu.core_type = #tpu.core_type<tc>} {
    %c0 = arith.constant 0 : index
    %c0_0 = arith.constant 0 : index
    %0 = vector.load %arg0[%c0, %c0_0] : memref<64x64xbf16, #tpu.memory_space<vmem>>, vector<64x64xbf16>
    %c0_1 = arith.constant 0 : index
    %c0_2 = arith.constant 0 : index
    %1 = vector.load %arg1[%c0_1, %c0_2] : memref<64x32xbf16, #tpu.memory_space<vmem>>, vector<64x32xbf16>
    %cst = arith.constant dense<0.000000e+00> : vector<64x32xf32>
    %2 = tpu.matmul %0, %1, %cst {dimension_numbers = #tpu.dot_dimension_numbers<[1], [0], [0], [1], [0, 0, 1, 1], [], []>} : vector<64x64xbf16>, vector<64x32xbf16>, vector<64x32xf32> -> vector<64x32xf32>
    %c0_3 = arith.constant 0 : index
    %c0_4 = arith.constant 0 : index
    %3 = vector.load %arg2[%c0_3, %c0_4] : memref<1x32xf32, #tpu.memory_space<vmem>>, vector<1x32xf32>
    %4 = vector.broadcast %3 : vector<1x32xf32> to vector<64x32xf32>
    %5 = arith.addf %2, %4 : vector<64x32xf32>
    %c0_5 = arith.constant 0 : index
    %c0_6 = arith.constant 0 : index
    %6 = vector.load %arg5[%c0_5, %c0_6] : memref<64x32xf32, #tpu.memory_space<vmem>>, vector<64x32xf32>
    %c0_7 = arith.constant 0 : index
    %c0_8 = arith.constant 0 : index
    %7 = vector.load %arg3[%c0_7, %c0_8] : memref<32x32xf32, #tpu.memory_space<vmem>>, vector<32x32xf32>
    %c0_9 = arith.constant 0 : index
    %c0_10 = arith.constant 0 : index
    %8 = vector.load %arg4[%c0_9, %c0_10] : memref<1x32xf32, #tpu.memory_space<vmem>>, vector<1x32xf32>
    %9 = vector.shape_cast %8 : vector<1x32xf32> to vector<1x32xf32>
    %10 = vector.broadcast %9 : vector<1x32xf32> to vector<8x32xf32>
    %11 = vector.extract_strided_slice %10 {offsets = [0, 0], sizes = [8, 16], strides = [1, 1]} : vector<8x32xf32> to vector<8x16xf32>
    %12 = vector.extract_strided_slice %10 {offsets = [0, 16], sizes = [8, 16], strides = [1, 1]} : vector<8x32xf32> to vector<8x16xf32>
    %13 = vector.extract_strided_slice %5 {offsets = [0, 0], sizes = [8, 32], strides = [1, 1]} : vector<64x32xf32> to vector<8x32xf32>
    %14 = vector.extract_strided_slice %6 {offsets = [0, 0], sizes = [8, 32], strides = [1, 1]} : vector<64x32xf32> to vector<8x32xf32>
    %cst_11 = arith.constant dense<0.000000e+00> : vector<8x32xf32>
    %15 = tpu.matmul %10, %7, %cst_11 {dimension_numbers = #tpu.dot_dimension_numbers<[1], [0], [0], [1], [0, 0, 1, 1], [], []>} : vector<8x32xf32>, vector<32x32xf32>, vector<8x32xf32> -> vector<8x32xf32>
    %16 = arith.addf %13, %15 : vector<8x32xf32>
    %17 = math.tanh %16 : vector<8x32xf32>
    %18 = arith.mulf %17, %14 : vector<8x32xf32>
    %19 = vector.extract_strided_slice %18 {offsets = [0, 0], sizes = [8, 16], strides = [1, 1]} : vector<8x32xf32> to vector<8x16xf32>
    %20 = vector.extract_strided_slice %18 {offsets = [0, 16], sizes = [8, 16], strides = [1, 1]} : vector<8x32xf32> to vector<8x16xf32>
    %21 = vector.extract_strided_slice %5 {offsets = [8, 0], sizes = [8, 32], strides = [1, 1]} : vector<64x32xf32> to vector<8x32xf32>
    %22 = vector.extract_strided_slice %6 {offsets = [8, 0], sizes = [8, 32], strides = [1, 1]} : vector<64x32xf32> to vector<8x32xf32>
    %cst_12 = arith.constant dense<0.000000e+00> : vector<8x32xf32>
    %23 = tpu.matmul %18, %7, %cst_12 {dimension_numbers = #tpu.dot_dimension_numbers<[1], [0], [0], [1], [0, 0, 1, 1], [], []>} : vector<8x32xf32>, vector<32x32xf32>, vector<8x32xf32> -> vector<8x32xf32>
    %24 = arith.addf %21, %23 : vector<8x32xf32>
    %25 = math.tanh %24 : vector<8x32xf32>
    %26 = arith.mulf %25, %22 : vector<8x32xf32>
    %27 = vector.extract_strided_slice %26 {offsets = [0, 0], sizes = [8, 16], strides = [1, 1]} : vector<8x32xf32> to vector<8x16xf32>
    %28 = vector.extract_strided_slice %26 {offsets = [0, 16], sizes = [8, 16], strides = [1, 1]} : vector<8x32xf32> to vector<8x16xf32>
    %29 = vector.extract_strided_slice %5 {offsets = [16, 0], sizes = [8, 32], strides = [1, 1]} : vector<64x32xf32> to vector<8x32xf32>
    %30 = vector.extract_strided_slice %6 {offsets = [16, 0], sizes = [8, 32], strides = [1, 1]} : vector<64x32xf32> to vector<8x32xf32>
    %cst_13 = arith.constant dense<0.000000e+00> : vector<8x32xf32>
    %31 = tpu.matmul %26, %7, %cst_13 {dimension_numbers = #tpu.dot_dimension_numbers<[1], [0], [0], [1], [0, 0, 1, 1], [], []>} : vector<8x32xf32>, vector<32x32xf32>, vector<8x32xf32> -> vector<8x32xf32>
    %32 = arith.addf %29, %31 : vector<8x32xf32>
    %33 = math.tanh %32 : vector<8x32xf32>
    %34 = arith.mulf %33, %30 : vector<8x32xf32>
    %35 = vector.extract_strided_slice %34 {offsets = [0, 0], sizes = [8, 16], strides = [1, 1]} : vector<8x32xf32> to vector<8x16xf32>
    %36 = vector.extract_strided_slice %34 {offsets = [0, 16], sizes = [8, 16], strides = [1, 1]} : vector<8x32xf32> to vector<8x16xf32>
    %37 = vector.extract_strided_slice %5 {offsets = [24, 0], sizes = [8, 32], strides = [1, 1]} : vector<64x32xf32> to vector<8x32xf32>
    %38 = vector.extract_strided_slice %6 {offsets = [24, 0], sizes = [8, 32], strides = [1, 1]} : vector<64x32xf32> to vector<8x32xf32>
    %cst_14 = arith.constant dense<0.000000e+00> : vector<8x32xf32>
    %39 = tpu.matmul %34, %7, %cst_14 {dimension_numbers = #tpu.dot_dimension_numbers<[1], [0], [0], [1], [0, 0, 1, 1], [], []>} : vector<8x32xf32>, vector<32x32xf32>, vector<8x32xf32> -> vector<8x32xf32>
    %40 = arith.addf %37, %39 : vector<8x32xf32>
    %41 = math.tanh %40 : vector<8x32xf32>
    %42 = arith.mulf %41, %38 : vector<8x32xf32>
    %43 = vector.extract_strided_slice %42 {offsets = [0, 0], sizes = [8, 16], strides = [1, 1]} : vector<8x32xf32> to vector<8x16xf32>
    %44 = vector.extract_strided_slice %42 {offsets = [0, 16], sizes = [8, 16], strides = [1, 1]} : vector<8x32xf32> to vector<8x16xf32>
    %45 = vector.extract_strided_slice %5 {offsets = [32, 0], sizes = [8, 32], strides = [1, 1]} : vector<64x32xf32> to vector<8x32xf32>
    %46 = vector.extract_strided_slice %6 {offsets = [32, 0], sizes = [8, 32], strides = [1, 1]} : vector<64x32xf32> to vector<8x32xf32>
    %cst_15 = arith.constant dense<0.000000e+00> : vector<8x32xf32>
    %47 = tpu.matmul %42, %7, %cst_15 {dimension_numbers = #tpu.dot_dimension_numbers<[1], [0], [0], [1], [0, 0, 1, 1], [], []>} : vector<8x32xf32>, vector<32x32xf32>, vector<8x32xf32> -> vector<8x32xf32>
    %48 = arith.addf %45, %47 : vector<8x32xf32>
    %49 = math.tanh %48 : vector<8x32xf32>
    %50 = arith.mulf %49, %46 : vector<8x32xf32>
    %51 = vector.extract_strided_slice %50 {offsets = [0, 0], sizes = [8, 16], strides = [1, 1]} : vector<8x32xf32> to vector<8x16xf32>
    %52 = vector.extract_strided_slice %50 {offsets = [0, 16], sizes = [8, 16], strides = [1, 1]} : vector<8x32xf32> to vector<8x16xf32>
    %53 = vector.extract_strided_slice %5 {offsets = [40, 0], sizes = [8, 32], strides = [1, 1]} : vector<64x32xf32> to vector<8x32xf32>
    %54 = vector.extract_strided_slice %6 {offsets = [40, 0], sizes = [8, 32], strides = [1, 1]} : vector<64x32xf32> to vector<8x32xf32>
    %cst_16 = arith.constant dense<0.000000e+00> : vector<8x32xf32>
    %55 = tpu.matmul %50, %7, %cst_16 {dimension_numbers = #tpu.dot_dimension_numbers<[1], [0], [0], [1], [0, 0, 1, 1], [], []>} : vector<8x32xf32>, vector<32x32xf32>, vector<8x32xf32> -> vector<8x32xf32>
    %56 = arith.addf %53, %55 : vector<8x32xf32>
    %57 = math.tanh %56 : vector<8x32xf32>
    %58 = arith.mulf %57, %54 : vector<8x32xf32>
    %59 = vector.extract_strided_slice %58 {offsets = [0, 0], sizes = [8, 16], strides = [1, 1]} : vector<8x32xf32> to vector<8x16xf32>
    %60 = vector.extract_strided_slice %58 {offsets = [0, 16], sizes = [8, 16], strides = [1, 1]} : vector<8x32xf32> to vector<8x16xf32>
    %61 = vector.extract_strided_slice %5 {offsets = [48, 0], sizes = [8, 32], strides = [1, 1]} : vector<64x32xf32> to vector<8x32xf32>
    %62 = vector.extract_strided_slice %6 {offsets = [48, 0], sizes = [8, 32], strides = [1, 1]} : vector<64x32xf32> to vector<8x32xf32>
    %cst_17 = arith.constant dense<0.000000e+00> : vector<8x32xf32>
    %63 = tpu.matmul %58, %7, %cst_17 {dimension_numbers = #tpu.dot_dimension_numbers<[1], [0], [0], [1], [0, 0, 1, 1], [], []>} : vector<8x32xf32>, vector<32x32xf32>, vector<8x32xf32> -> vector<8x32xf32>
    %64 = arith.addf %61, %63 : vector<8x32xf32>
    %65 = math.tanh %64 : vector<8x32xf32>
    %66 = arith.mulf %65, %62 : vector<8x32xf32>
    %67 = vector.extract_strided_slice %66 {offsets = [0, 0], sizes = [8, 16], strides = [1, 1]} : vector<8x32xf32> to vector<8x16xf32>
    %68 = vector.extract_strided_slice %66 {offsets = [0, 16], sizes = [8, 16], strides = [1, 1]} : vector<8x32xf32> to vector<8x16xf32>
    %69 = tpu.concatenate %11, %68 in 1 : vector<8x16xf32>, vector<8x16xf32> -> vector<8x32xf32>
    %70 = tpu.concatenate %19, %60 in 1 : vector<8x16xf32>, vector<8x16xf32> -> vector<8x32xf32>
    %71 = tpu.concatenate %27, %52 in 1 : vector<8x16xf32>, vector<8x16xf32> -> vector<8x32xf32>
    %72 = tpu.concatenate %35, %44 in 1 : vector<8x16xf32>, vector<8x16xf32> -> vector<8x32xf32>
    %73 = tpu.concatenate %43, %36 in 1 : vector<8x16xf32>, vector<8x16xf32> -> vector<8x32xf32>
    %74 = tpu.concatenate %51, %28 in 1 : vector<8x16xf32>, vector<8x16xf32> -> vector<8x32xf32>
    %75 = tpu.concatenate %59, %20 in 1 : vector<8x16xf32>, vector<8x16xf32> -> vector<8x32xf32>
    %76 = tpu.concatenate %67, %12 in 1 : vector<8x16xf32>, vector<8x16xf32> -> vector<8x32xf32>
    %77 = tpu.concatenate %69, %70, %71, %72, %73, %74, %75, %76 in 0 : vector<8x32xf32>, vector<8x32xf32>, vector<8x32xf32>, vector<8x32xf32>, vector<8x32xf32>, vector<8x32xf32>, vector<8x32xf32>, vector<8x32xf32> -> vector<64x32xf32>
    %78 = arith.truncf %77 : vector<64x32xf32> to vector<64x32xbf16>
    %c0_18 = arith.constant 0 : index
    %c0_19 = arith.constant 0 : index
    %79 = vector.load %arg6[%c0_18, %c0_19] : memref<64x32xbf16, #tpu.memory_space<vmem>>, vector<64x32xbf16>
    tpu.vector_store %arg6[%c0_18, %c0_19], %78 {strides = array<i32>} : memref<64x32xbf16, #tpu.memory_space<vmem>>, vector<64x32xbf16>,
    return
  }
}

</mosaic_0001>

<llo_original>
// kernel: tpu_custom_call.1
$region0: #{tpu_custom_call.1}
  #allocation0 [shape = 'u32[]', space=smem, size = 0x4, offset = 0x4, fixed_abs, tag = 'smem constant byte address 0x4 - core index']
  #allocation1 [shape = 'u32[72,128]{1,0:T(1,128)}', space=vmem, size = 0x9000, scoped, tag = 'internal scratch']
  %s0 = inlined_call_operand.vmem [shape: bf16[64,64], index: 0, kind: input, shape index: {}]
  %s1 = inlined_call_operand.vmem [shape: bf16[64,32], index: 1, kind: input, shape index: {}]
  %s2 = inlined_call_operand.vmem [shape: f32[1,32], index: 2, kind: input, shape index: {}]
  %s3 = inlined_call_operand.vmem [shape: f32[32,32], index: 3, kind: input, shape index: {}]
  %s4 = inlined_call_operand.vmem [shape: f32[1,32], index: 4, kind: input, shape index: {}]
  %s5 = inlined_call_operand.vmem [shape: f32[64,32], index: 5, kind: input, shape index: {}]
  %s6 = inlined_call_operand.vmem [shape: bf16[64,32], index: 6, kind: output, shape index: {}]
  %s7 = sld [smem:[#allocation0]]
  $region34: #{tpu_custom_call.1} parent=0
    _
  %s9 = ssub.s32 1, %s7
  %s10 = scalar_select 0, %s9, %s7
  // Predicated region
  $region2: #{tpu_custom_call.1} parent=0 // pred_check
    _
  $region3: #{tpu_custom_call.1} parent=0 // pred_check_branch
    %12 = sbr.rel (0) target = $region5
  $region4: #{tpu_custom_call.1} parent=0 // pred_region
    _
  $region5: #{tpu_custom_call.1} parent=0 // pred_fallthru
    _
  // Predicated region
  $region6: #{tpu_custom_call.1} parent=0 // pred_check
    _
  $region7: #{tpu_custom_call.1} parent=0 // pred_check_branch
    %14 = sbr.rel (0) target = $region9
  $region8: #{tpu_custom_call.1} parent=0 // pred_region
    _
  $region9: #{tpu_custom_call.1} parent=0 // pred_fallthru
    _
  // Predicated region
  $region10: #{tpu_custom_call.1} parent=0 // pred_check
    _
  $region11: #{tpu_custom_call.1} parent=0 // pred_check_branch
    %16 = sbr.rel (0) target = $region13
  $region12: #{tpu_custom_call.1} parent=0 // pred_region
    _
  $region13: #{tpu_custom_call.1} parent=0 // pred_fallthru
    _
  // Predicated region
  $region14: #{tpu_custom_call.1} parent=0 // pred_check
    _
  $region15: #{tpu_custom_call.1} parent=0 // pred_check_branch
    %18 = sbr.rel (0) target = $region17
  $region16: #{tpu_custom_call.1} parent=0 // pred_region
    _
  $region17: #{tpu_custom_call.1} parent=0 // pred_fallthru
    _
  // Predicated region
  $region18: #{tpu_custom_call.1} parent=0 // pred_check
    _
  $region19: #{tpu_custom_call.1} parent=0 // pred_check_branch
    %20 = sbr.rel (0) target = $region21
  $region20: #{tpu_custom_call.1} parent=0 // pred_region
    _
  $region21: #{tpu_custom_call.1} parent=0 // pred_fallthru
    _
  // Predicated region
  $region22: #{tpu_custom_call.1} parent=0 // pred_check
    _
  $region23: #{tpu_custom_call.1} parent=0 // pred_check_branch
    %22 = sbr.rel (0) target = $region25
  $region24: #{tpu_custom_call.1} parent=0 // pred_region
    _
  $region25: #{tpu_custom_call.1} parent=0 // pred_fallthru
    _
  %v24 = vld [vmem:[%s0] sm:$0xf]
  %v25 = vld [vmem:[%s0 + $0x4] sm:$0xf]
  %v26 = vld [vmem:[%s0 + $0x8] sm:$0xf]
  %v27 = vld [vmem:[%s0 + $0xc] sm:$0xf]
  %v28 = vld [vmem:[%s0 + $0x10] sm:$0xf]
  %v29 = vld [vmem:[%s0 + $0x14] sm:$0xf]
  %v30 = vld [vmem:[%s0 + $0x18] sm:$0xf]
  %v31 = vld [vmem:[%s0 + $0x1c] sm:$0xf]
  %v32 = vld [vmem:[%s1] sm:$0xf]
  %v33 = vld [vmem:[%s1 + $0x4] sm:$0xf]
  %v34 = vld [vmem:[%s1 + $0x8] sm:$0xf]
  %v35 = vld [vmem:[%s1 + $0xc] sm:$0xf]
  %v36 = vld [vmem:[%s1 + $0x10] sm:$0xf]
  %v37 = vld [vmem:[%s1 + $0x14] sm:$0xf]
  %v38 = vld [vmem:[%s1 + $0x18] sm:$0xf]
  %v39 = vld [vmem:[%s1 + $0x1c] sm:$0xf]
  %v40 = vld [vmem:[%s2] sm:$0x1]
  %v42 = vperm.slane %v40, 0
  %v52 = vunpack.c.l.b16 %v24
  %v53 = vunpack.c.l.b16 %v25
  %v54 = vunpack.c.l.b16 %v26
  %v55 = vunpack.c.l.b16 %v27
  %v56 = vunpack.c.l.b16 %v28
  %v57 = vunpack.c.l.b16 %v29
  %v58 = vunpack.c.l.b16 %v30
  %v59 = vunpack.c.l.b16 %v31
  %v60 = vpack.c.b16 %v53, %v52
  %v61 = vpack.c.b16 %v55, %v54
  %v62 = vpack.c.b16 %v57, %v56
  %v63 = vpack.c.b16 %v59, %v58
  %v72 = vunpack.c.l.b16 %v32
  %v73 = vunpack.c.l.b16 %v33
  %v74 = vunpack.c.l.b16 %v34
  %v75 = vunpack.c.l.b16 %v35
  %v76 = vunpack.c.l.b16 %v36
  %v77 = vunpack.c.l.b16 %v37
  %v78 = vunpack.c.l.b16 %v38
  %v79 = vunpack.c.l.b16 %v39
  %v80 = vpack.c.b16 %v73, %v72
  %v81 = vpack.c.b16 %v75, %v74
  %v82 = vpack.c.b16 %v77, %v76
  %v83 = vpack.c.b16 %v79, %v78
  %vm88 = vcmask 523264
  %v90 = vsel %vm88, %v60, 0
  %v93 = vsel %vm88, %v61, 0
  %v96 = vsel %vm88, %v62, 0
  %v99 = vsel %vm88, %v63, 0
  %101 = vmatpush.bf16.msra.mxu0 0
  %102 = vmatpush.bf16.msra.mxu0 0
  %103 = vmatpush.bf16.msra.mxu0 0
  %104 = vmatpush.bf16.msra.mxu0 0
  %105 = vmatpush.bf16.msra.mxu0 %v83
  %106 = vmatpush.bf16.msra.mxu0 %v82
  %107 = vmatpush.bf16.msra.mxu0 %v81
  %108 = vmatpush.bf16.msra.mxu0 %v80
  %109 = vmatmul.bf16.gmra.mxu0 %v90
  %v110 = vpop.f32.mrf.mxu0
  %v111 = vadd.f32 %v42, %v110
  %v112 = vpop.f32.mrf.mxu0
  %v113 = vadd.f32 %v42, %v112
  %114 = vmatmul.bf16.gmra.mxu0 %v93
  %v115 = vpop.f32.mrf.mxu0
  %v116 = vadd.f32 %v42, %v115
  %v117 = vpop.f32.mrf.mxu0
  %v118 = vadd.f32 %v42, %v117
  %119 = vmatmul.bf16.gmra.mxu0 %v96
  %v120 = vpop.f32.mrf.mxu0
  %v121 = vadd.f32 %v42, %v120
  %v122 = vpop.f32.mrf.mxu0
  %v123 = vadd.f32 %v42, %v122
  %124 = vmatmul.bf16.gmra.mxu0 %v99
  %v125 = vpop.f32.mrf.mxu0
  %v126 = vadd.f32 %v42, %v125
  %v127 = vpop.f32.mrf.mxu0
  %128 = vdwg.mxu0
  %v129 = vld [vmem:[%s5] sm:$0xff]
  %v130 = vld [vmem:[%s5 + $0x8] sm:$0xff]
  %v131 = vld [vmem:[%s5 + $0x10] sm:$0xff]
  %v132 = vld [vmem:[%s5 + $0x18] sm:$0xff]
  %v133 = vld [vmem:[%s5 + $0x20] sm:$0xff]
  %v134 = vld [vmem:[%s5 + $0x28] sm:$0xff]
  %v135 = vld [vmem:[%s5 + $0x30] sm:$0xff]
  %v136 = vld [vmem:[%s3] sm:$0xff]
  %v137 = vld [vmem:[%s3 + $0x8] sm:$0xff]
  %v138 = vld [vmem:[%s3 + $0x10] sm:$0xff]
  %v139 = vld [vmem:[%s3 + $0x18] sm:$0xff]
  %v140 = vld [vmem:[%s4] sm:$0x1]
  %v142 = vperm.slane %v140, 0
  %vm144 = vcmask 261120
  %v145 = vsel %vm144, %v142, 0
  %147 = vmatpush.msra.mxu0 0.0
  %148 = vmatpush.msra.mxu0 0.0
  %149 = vmatpush.msra.mxu0 0.0
  %150 = vmatpush.msra.mxu0 0.0
  %151 = vmatpush.msra.mxu0 0.0
  %152 = vmatpush.msra.mxu0 0.0
  %153 = vmatpush.msra.mxu0 0.0
  %154 = vmatpush.msra.mxu0 0.0
  %155 = vmatpush.msra.mxu0 0.0
  %156 = vmatpush.msra.mxu0 0.0
  %157 = vmatpush.msra.mxu0 0.0
  %158 = vmatpush.msra.mxu0 0.0
  %159 = vmatpush.msra.mxu0 %v139
  %160 = vmatpush.msra.mxu0 %v138
  %161 = vmatpush.msra.mxu0 %v137
  %162 = vmatpush.msra.mxu0 %v136
  %163 = vmatmul.f32.gmra.mxu0 %v145
  %v164 = vpop.f32.mrf.mxu0
  %v165 = vadd.f32 0.0, %v164
  %166 = vdwg.mxu0
  %v167 = vadd.f32 %v111, %v165
  %v168 = vtanh.pop %v167
  %v169 = vmul.f32 %v168, %v129
  %v171 = vsel %vm144, %v169, 0
  %173 = vmatpush.msra.mxu0 0.0
  %174 = vmatpush.msra.mxu0 0.0
  %175 = vmatpush.msra.mxu0 0.0
  %176 = vmatpush.msra.mxu0 0.0
  %177 = vmatpush.msra.mxu0 0.0
  %178 = vmatpush.msra.mxu0 0.0
  %179 = vmatpush.msra.mxu0 0.0
  %180 = vmatpush.msra.mxu0 0.0
  %181 = vmatpush.msra.mxu0 0.0
  %182 = vmatpush.msra.mxu0 0.0
  %183 = vmatpush.msra.mxu0 0.0
  %184 = vmatpush.msra.mxu0 0.0
  %185 = vmatpush.msra.mxu0 %v139
  %186 = vmatpush.msra.mxu0 %v138
  %187 = vmatpush.msra.mxu0 %v137
  %188 = vmatpush.msra.mxu0 %v136
  %189 = vmatmul.f32.gmra.mxu0 %v171
  %v190 = vpop.f32.mrf.mxu0
  %v191 = vadd.f32 0.0, %v190
  %192 = vdwg.mxu0
  %v193 = vadd.f32 %v113, %v191
  %v194 = vtanh.pop %v193
  %v195 = vmul.f32 %v194, %v130
  %v197 = vsel %vm144, %v195, 0
  %199 = vmatpush.msra.mxu0 0.0
  %200 = vmatpush.msra.mxu0 0.0
  %201 = vmatpush.msra.mxu0 0.0
  %202 = vmatpush.msra.mxu0 0.0
  %203 = vmatpush.msra.mxu0 0.0
  %204 = vmatpush.msra.mxu0 0.0
  %205 = vmatpush.msra.mxu0 0.0
  %206 = vmatpush.msra.mxu0 0.0
  %207 = vmatpush.msra.mxu0 0.0
  %208 = vmatpush.msra.mxu0 0.0
  %209 = vmatpush.msra.mxu0 0.0
  %210 = vmatpush.msra.mxu0 0.0
  %211 = vmatpush.msra.mxu0 %v139
  %212 = vmatpush.msra.mxu0 %v138
  %213 = vmatpush.msra.mxu0 %v137
  %214 = vmatpush.msra.mxu0 %v136
  %215 = vmatmul.f32.gmra.mxu0 %v197
  %v216 = vpop.f32.mrf.mxu0
  %v217 = vadd.f32 0.0, %v216
  %218 = vdwg.mxu0
  %v219 = vadd.f32 %v116, %v217
  %v220 = vtanh.pop %v219
  %v221 = vmul.f32 %v220, %v131
  %v223 = vsel %vm144, %v221, 0
  %225 = vmatpush.msra.mxu0 0.0
  %226 = vmatpush.msra.mxu0 0.0
  %227 = vmatpush.msra.mxu0 0.0
  %228 = vmatpush.msra.mxu0 0.0
  %229 = vmatpush.msra.mxu0 0.0
  %230 = vmatpush.msra.mxu0 0.0
  %231 = vmatpush.msra.mxu0 0.0
  %232 = vmatpush.msra.mxu0 0.0
  %233 = vmatpush.msra.mxu0 0.0
  %234 = vmatpush.msra.mxu0 0.0
  %235 = vmatpush.msra.mxu0 0.0
  %236 = vmatpush.msra.mxu0 0.0
  %237 = vmatpush.msra.mxu0 %v139
  %238 = vmatpush.msra.mxu0 %v138
  %239 = vmatpush.msra.mxu0 %v137
  %240 = vmatpush.msra.mxu0 %v136
  %241 = vmatmul.f32.gmra.mxu0 %v223
  %v242 = vpop.f32.mrf.mxu0
  %v243 = vadd.f32 0.0, %v242
  %244 = vdwg.mxu0
  %v245 = vadd.f32 %v118, %v243
  %v246 = vtanh.pop %v245
  %v247 = vmul.f32 %v246, %v132
  %v249 = vsel %vm144, %v247, 0
  %251 = vmatpush.msra.mxu0 0.0
  %252 = vmatpush.msra.mxu0 0.0
  %253 = vmatpush.msra.mxu0 0.0
  %254 = vmatpush.msra.mxu0 0.0
  %255 = vmatpush.msra.mxu0 0.0
  %256 = vmatpush.msra.mxu0 0.0
  %257 = vmatpush.msra.mxu0 0.0
  %258 = vmatpush.msra.mxu0 0.0
  %259 = vmatpush.msra.mxu0 0.0
  %260 = vmatpush.msra.mxu0 0.0
  %261 = vmatpush.msra.mxu0 0.0
  %262 = vmatpush.msra.mxu0 0.0
  %263 = vmatpush.msra.mxu0 %v139
  %264 = vmatpush.msra.mxu0 %v138
  %265 = vmatpush.msra.mxu0 %v137
  %266 = vmatpush.msra.mxu0 %v136
  %267 = vmatmul.f32.gmra.mxu0 %v249
  %v268 = vpop.f32.mrf.mxu0
  %v269 = vadd.f32 0.0, %v268
  %270 = vdwg.mxu0
  %v271 = vadd.f32 %v121, %v269
  %v272 = vtanh.pop %v271
  %v273 = vmul.f32 %v272, %v133
  %v275 = vsel %vm144, %v273, 0
  %277 = vmatpush.msra.mxu0 0.0
  %278 = vmatpush.msra.mxu0 0.0
  %279 = vmatpush.msra.mxu0 0.0
  %280 = vmatpush.msra.mxu0 0.0
  %281 = vmatpush.msra.mxu0 0.0
  %282 = vmatpush.msra.mxu0 0.0
  %283 = vmatpush.msra.mxu0 0.0
  %284 = vmatpush.msra.mxu0 0.0
  %285 = vmatpush.msra.mxu0 0.0
  %286 = vmatpush.msra.mxu0 0.0
  %287 = vmatpush.msra.mxu0 0.0
  %288 = vmatpush.msra.mxu0 0.0
  %289 = vmatpush.msra.mxu0 %v139
  %290 = vmatpush.msra.mxu0 %v138
  %291 = vmatpush.msra.mxu0 %v137
  %292 = vmatpush.msra.mxu0 %v136
  %293 = vmatmul.f32.gmra.mxu0 %v275
  %v294 = vpop.f32.mrf.mxu0
  %v295 = vadd.f32 0.0, %v294
  %296 = vdwg.mxu0
  %v297 = vadd.f32 %v123, %v295
  %v298 = vtanh.pop %v297
  %v299 = vmul.f32 %v298, %v134
  %v301 = vsel %vm144, %v299, 0
  %303 = vmatpush.msra.mxu0 0.0
  %304 = vmatpush.msra.mxu0 0.0
  %305 = vmatpush.msra.mxu0 0.0
  %306 = vmatpush.msra.mxu0 0.0
  %307 = vmatpush.msra.mxu0 0.0
  %308 = vmatpush.msra.mxu0 0.0
  %309 = vmatpush.msra.mxu0 0.0
  %310 = vmatpush.msra.mxu0 0.0
  %311 = vmatpush.msra.mxu0 0.0
  %312 = vmatpush.msra.mxu0 0.0
  %313 = vmatpush.msra.mxu0 0.0
  %314 = vmatpush.msra.mxu0 0.0
  %315 = vmatpush.msra.mxu0 %v139
  %316 = vmatpush.msra.mxu0 %v138
  %317 = vmatpush.msra.mxu0 %v137
  %318 = vmatpush.msra.mxu0 %v136
  %319 = vmatmul.f32.gmra.mxu0 %v301
  %v320 = vpop.f32.mrf.mxu0
  %v321 = vadd.f32 0.0, %v320
  %322 = vdwg.mxu0
  %v323 = vadd.f32 %v126, %v321
  %v324 = vtanh.pop %v323
  %v325 = vmul.f32 %v324, %v135
  %vm326 = vcmask 130048
  %v327 = vsel %vm326, %v142, %v325
  %v328 = vsel %vm326, %v169, %v299
  %v329 = vsel %vm326, %v195, %v273
  %v330 = vsel %vm326, %v221, %v247
  %v331 = vsel %vm326, %v247, %v221
  %v332 = vsel %vm326, %v273, %v195
  %v333 = vsel %vm326, %v299, %v169
  %v334 = vsel %vm326, %v325, %v142
  %v335 = vpack.c.bf16 %v327, %v327
  %v336 = vpack.c.bf16 %v328, %v328
  %v337 = vpack.c.bf16 %v329, %v329
  %v338 = vpack.c.bf16 %v330, %v330
  %v339 = vpack.c.bf16 %v331, %v331
  %v340 = vpack.c.bf16 %v332, %v332
  %v341 = vpack.c.bf16 %v333, %v333
  %v342 = vpack.c.bf16 %v334, %v334
  %vm343 = vcmask 257024
  %344 = vst.msk [vmem:[%s6] sm:$0xf] %vm343, %v335
  %345 = vst.msk [vmem:[%s6 + $0x4] sm:$0xf] %vm343, %v336
  %346 = vst.msk [vmem:[%s6 + $0x8] sm:$0xf] %vm343, %v337
  %347 = vst.msk [vmem:[%s6 + $0xc] sm:$0xf] %vm343, %v338
  %348 = vst.msk [vmem:[%s6 + $0x10] sm:$0xf] %vm343, %v339
  %349 = vst.msk [vmem:[%s6 + $0x14] sm:$0xf] %vm343, %v340
  %350 = vst.msk [vmem:[%s6 + $0x18] sm:$0xf] %vm343, %v341
  %351 = vst.msk [vmem:[%s6 + $0x1c] sm:$0xf] %vm343, %v342
  // Predicated region
  $region26: #{tpu_custom_call.1} parent=0 // pred_check
    _
  $region27: #{tpu_custom_call.1} parent=0 // pred_check_branch
    %353 = sbr.rel (0) target = $region29
  $region28: #{tpu_custom_call.1} parent=0 // pred_region
    _
  $region29: #{tpu_custom_call.1} parent=0 // pred_fallthru
    _
  // Predicated region
  $region30: #{tpu_custom_call.1} parent=0 // pred_check
    _
  $region31: #{tpu_custom_call.1} parent=0 // pred_check_branch
    %355 = sbr.rel (0) target = $region33
  $region32: #{tpu_custom_call.1} parent=0 // pred_region
    _
  $region33: #{tpu_custom_call.1} parent=0 // pred_fallthru
    _

</llo_original>
